<compile_context>
chip_gen: v5e
topology: v5e:2x2
jax: 0.10.0
libtpu: 0.0.40
codegen_flags: <defaults>
</compile_context>

<pallas_src>
import jax
import jax.numpy as jnp
from jax.experimental import pallas as pl
from jax.experimental.pallas import tpu as pltpu


LANE = 128
_MIB = 1024 * 1024


def _round_up(v, m):
    return ((v + m - 1) // m) * m


def _vmem_budget_bytes():
    """Per-generation VMEM budget with headroom for Mosaic internal scratch.

    v5e/v6e: 128 MiB physical -> ~96 MiB budget; v7x: 64 MiB -> ~48 MiB.
    Falls back to a conservative 48 MiB (v7x-safe) if the query is unavailable.
    """
    try:
        cap = int(pltpu.get_tpu_info().vmem_capacity_bytes)
    except Exception:
        cap = 64 * _MIB
    return int(cap * 3 // 4)


def _choose_k_tile(tb_max, d_pad, nc_pad, budget, block_k):
    """Pick the K (feature/reduction) tile size. Prefer fully-resident W."""

    def fits(tk):
        # 2x (double-buffered) x & W tiles + resident f32 output tile + bias.
        return 4 * (2 * tb_max * tk + 2 * tk * nc_pad
                    + tb_max * nc_pad + 2 * nc_pad) <= budget

    if fits(d_pad):
        return d_pad  # single K step: constant W block index -> loaded once
    tk = min(_round_up(block_k, LANE), d_pad)
    while tk > 512 and not fits(tk):
        tk = max(512, tk // 2)
    return tk


def _linear_decision_kernel(x_ref, w_ref, b_ref, o_ref):
    """One (tb, nc_pad) output tile; grid axis 1 walks the K (feature) dim.

    The output block index is constant along k, so o_ref stays resident in
    VMEM and serves directly as the f32 accumulator (no scratch buffer, no
    epilogue copy). The bias is folded into the init at k == 0.
    """

    @pl.when(pl.program_id(1) == 0)
    def _init():
        o_ref[...] = jnp.broadcast_to(b_ref[...], o_ref.shape)

    o_ref[...] += jnp.dot(x_ref[...], w_ref[...],
                          preferred_element_type=jnp.float32)


def linear_decision_function(x2d, w_pad, b_pad, *, tk, block_b=512,
                             vmem_budget=None):
    """x2d: (B, D) f32; w_pad: (k_pad, nc_pad) f32 (padded once at init);
    b_pad: (1, nc_pad) f32. Returns (B, nc_pad) f32 decision scores; caller
    slices columns back to the true class count."""
    B, D = x2d.shape
    k_pad, nc_pad = w_pad.shape
    assert k_pad % tk == 0 and k_pad >= D
    if vmem_budget is None:
        vmem_budget = _vmem_budget_bytes()

    # Batch tile: multiple of 8 sublanes; use >=2 tiles whenever B > 8 so the
    # "parallel" axis can shard across TensorCores (v7x megacore).
    tb = min(block_b, _round_up(B, 8))
    if B > 8 and _round_up(B, tb) // tb < 2:
        tb = _round_up(-(-B // 2), 8)
    b_rows = _round_up(B, tb)

    # Only the cheap per-call pad of x; W/b were padded once at construction.
    x_p = x2d
    if b_rows != B or k_pad != D:
        x_p = jnp.pad(x2d, ((0, b_rows - B), (0, k_pad - D)))

    n_b_tiles = b_rows // tb
    k_steps = k_pad // tk
    grid = (n_b_tiles, k_steps)

    tile_bytes = 4 * (2 * tb * tk + 2 * tk * nc_pad + tb * nc_pad + 2 * nc_pad)
    vmem_limit = int(min(max(2 * tile_bytes, 32 * _MIB), vmem_budget))

    # With a single K step the W block index is constant over the whole grid
    # (loaded once); otherwise W is re-streamed once per batch tile.
    w_reads = 1 if k_steps == 1 else n_b_tiles
    cost = pl.CostEstimate(
        flops=2 * b_rows * k_pad * nc_pad,
        transcendentals=0,
        bytes_accessed=4 * (b_rows * k_pad
                            + w_reads * k_pad * nc_pad
                            + b_rows * nc_pad),
    )

    out = pl.pallas_call(
        _linear_decision_kernel,
        out_shape=jax.ShapeDtypeStruct((b_rows, nc_pad), jnp.float32),
        grid_spec=pltpu.PrefetchScalarGridSpec(
            num_scalar_prefetch=0,
            grid=grid,
            in_specs=[
                pl.BlockSpec((tb, tk), lambda i, k: (i, k)),
                pl.BlockSpec((tk, nc_pad), lambda i, k: (k, 0)),
                pl.BlockSpec((1, nc_pad), lambda i, k: (0, 0)),
            ],
            out_specs=pl.BlockSpec((tb, nc_pad), lambda i, k: (i, 0)),
        ),
        compiler_params=pltpu.CompilerParams(
            dimension_semantics=("parallel", "arbitrary"),
            vmem_limit_bytes=vmem_limit,
        ),
        cost_estimate=cost,
    )(x_p, w_pad, b_pad)

    return out[:B]


class SecmlLayer:
    """JAX/Pallas re-implementation of the PyTorch SecmlLayer wrapper.

    Wraps a (synthetic, linear) secml classifier. forward(x) returns the
    classifier decision scores and tracks the function-call counter, exactly
    like SecmlAutogradFunction.forward (counter += batch size).
    """

    def __init__(self, in_features, num_classes, key, block_b=512, block_k=4096):
        kw, kb = jax.random.split(key)
        self.in_features = in_features
        self.num_classes = num_classes
        self.block_b = block_b
        # Deterministic synthetic classifier parameters (linear secml clf over
        # flattened inputs).
        self.w = jax.random.normal(kw, (in_features, num_classes), jnp.float32) * 0.01
        self.b = jax.random.normal(kb, (1, num_classes), jnp.float32) * 0.01

        # Lane/tile-padded copies + tiling decision, built exactly once here
        # (never on the per-call hot path).
        d_pad = _round_up(in_features, LANE)
        nc_pad = _round_up(num_classes, LANE)
        self.vmem_budget = _vmem_budget_bytes()
        self.tk = _choose_k_tile(block_b, d_pad, nc_pad, self.vmem_budget, block_k)
        k_pad = _round_up(d_pad, self.tk)
        self.w_pad = jnp.pad(
            self.w, ((0, k_pad - in_features), (0, nc_pad - num_classes)))
        self.b_pad = jnp.pad(self.b, ((0, 0), (0, nc_pad - num_classes)))

        self.func_counter = 0
        self.grad_counter = 0

    def reset(self):
        self.func_counter = 0
        self.grad_counter = 0

    def forward(self, x):
        # x: NCHW (B, C, H, W) -> flatten to (B, D), matching the
        # as_carray/as_tensor round-trip (decision_function on row samples).
        B = x.shape[0]
        x2d = x.reshape(B, -1).astype(jnp.float32)
        # func_call_counter += input.shape[0]
        # TODO(synk): Python-side counter; will not increment under jax.jit.
        self.func_counter += B
        scores = linear_decision_function(
            x2d, self.w_pad, self.b_pad,
            tk=self.tk, block_b=self.block_b, vmem_budget=self.vmem_budget)
        # Slice padded class lanes back to the true class count.
        return scores[:, : self.num_classes]
        # TODO(synk): backward (clf.gradient / autograd linkage) not implemented;
        # only the forward decision_function hot path is a Pallas kernel.

    __call__ = forward


if __name__ == "__main__":
    key = jax.random.PRNGKey(0)
    kx, kp = jax.random.split(key)

    B, C, H, W = 2, 4, 16, 16
    NUM_CLASSES = 10
    D = C * H * W

    x = jax.random.normal(kx, (B, C, H, W), jnp.float32)

    layer = SecmlLayer(in_features=D, num_classes=NUM_CLASSES, key=kp)
    out = layer(x)
    out = jax.block_until_ready(out)

    # Reference check (plain JAX) to make sure the kernel matches semantics.
    ref = x.reshape(B, -1) @ layer.w + layer.b
    assert out.shape == (B, NUM_CLASSES)
    assert jnp.allclose(out, ref, atol=1e-4, rtol=1e-4)
    assert layer.func_counter == B

    print("KERNEL_OK")
</pallas_src>

<mosaic_0001>
module attributes {stable_mosaic.version = 11 : i64} {
  func.func @_linear_decision_kernel(%arg0: i32, %arg1: i32, %arg2: memref<8x1024xf32, #tpu.memory_space<vmem>>, %arg3: memref<1024x128xf32, #tpu.memory_space<vmem>>, %arg4: memref<1x128xf32, #tpu.memory_space<vmem>>, %arg5: memref<8x128xf32, #tpu.memory_space<vmem>>) attributes {dimension_semantics = [#tpu.dimension_semantics<parallel>, #tpu.dimension_semantics<arbitrary>], iteration_bounds = array<i64: 1, 1>, scalar_prefetch = 0 : i64, scratch_operands = 0 : i64, tpu.core_type = #tpu.core_type<tc>, window_params = [{transform_indices = @transform_0, window_bounds = array<i64: 8, 1024>}, {transform_indices = @transform_1, window_bounds = array<i64: 1024, 128>}, {pipeline_mode = #tpu.pipeline_mode<synchronous>, transform_indices = @transform_2, window_bounds = array<i64: 1, 128>}, {transform_indices = @transform_3, window_bounds = array<i64: 8, 128>}]} {
    %c0_i32 = arith.constant 0 : i32
    %0 = arith.cmpi eq, %arg1, %c0_i32 : i32
    %1 = arith.extui %0 : i1 to i32
    %c0_i32_0 = arith.constant 0 : i32
    %2 = arith.cmpi ne, %1, %c0_i32_0 : i32
    scf.if %2 {
      %c0_8 = arith.constant 0 : index
      %c0_9 = arith.constant 0 : index
      %9 = vector.load %arg4[%c0_8, %c0_9] : memref<1x128xf32, #tpu.memory_space<vmem>>, vector<1x128xf32>
      %10 = vector.shape_cast %9 : vector<1x128xf32> to vector<1x128xf32>
      %11 = vector.broadcast %10 : vector<1x128xf32> to vector<8x128xf32>
      %c0_10 = arith.constant 0 : index
      %c0_11 = arith.constant 0 : index
      %12 = vector.load %arg5[%c0_10, %c0_11] : memref<8x128xf32, #tpu.memory_space<vmem>>, vector<8x128xf32>
      tpu.vector_store %arg5[%c0_10, %c0_11], %11 {strides = array<i32>} : memref<8x128xf32, #tpu.memory_space<vmem>>, vector<8x128xf32>,
    } else {
    }
    %c0 = arith.constant 0 : index
    %c0_1 = arith.constant 0 : index
    %3 = vector.load %arg5[%c0, %c0_1] : memref<8x128xf32, #tpu.memory_space<vmem>>, vector<8x128xf32>
    %c0_2 = arith.constant 0 : index
    %c0_3 = arith.constant 0 : index
    %4 = vector.load %arg2[%c0_2, %c0_3] : memref<8x1024xf32, #tpu.memory_space<vmem>>, vector<8x1024xf32>
    %c0_4 = arith.constant 0 : index
    %c0_5 = arith.constant 0 : index
    %5 = vector.load %arg3[%c0_4, %c0_5] : memref<1024x128xf32, #tpu.memory_space<vmem>>, vector<1024x128xf32>
    %cst = arith.constant dense<0.000000e+00> : vector<8x128xf32>
    %6 = tpu.matmul %4, %5, %cst {dimension_numbers = #tpu.dot_dimension_numbers<[1], [0], [0], [1], [0, 0, 1, 1], [], []>} : vector<8x1024xf32>, vector<1024x128xf32>, vector<8x128xf32> -> vector<8x128xf32>
    %7 = arith.addf %3, %6 : vector<8x128xf32>
    %c0_6 = arith.constant 0 : index
    %c0_7 = arith.constant 0 : index
    %8 = vector.load %arg5[%c0_6, %c0_7] : memref<8x128xf32, #tpu.memory_space<vmem>>, vector<8x128xf32>
    tpu.vector_store %arg5[%c0_6, %c0_7], %7 {strides = array<i32>} : memref<8x128xf32, #tpu.memory_space<vmem>>, vector<8x128xf32>,
    return
  }
  func.func @transform_0(%arg0: i32, %arg1: i32) -> (i32, i32) {
    %c0_i32 = arith.constant 0 : i32
    return %arg0, %arg1 : i32, i32
  }
  func.func @transform_1(%arg0: i32, %arg1: i32) -> (i32, i32) {
    %c0_i32 = arith.constant 0 : i32
    %c0_i32_0 = arith.constant 0 : i32
    return %arg1, %c0_i32 : i32, i32
  }
  func.func @transform_2(%arg0: i32, %arg1: i32) -> (i32, i32) {
    %c0_i32 = arith.constant 0 : i32
    %c0_i32_0 = arith.constant 0 : i32
    %c0_i32_1 = arith.constant 0 : i32
    return %c0_i32, %c0_i32_0 : i32, i32
  }
  func.func @transform_3(%arg0: i32, %arg1: i32) -> (i32, i32) {
    %c0_i32 = arith.constant 0 : i32
    %c0_i32_0 = arith.constant 0 : i32
    return %arg0, %c0_i32 : i32, i32
  }
}

</mosaic_0001>

<llo_original>
// kernel: tpu_custom_call.1
$region0: #{tpu_custom_call.1}
  #allocation0 [shape = 'u32[]', space=smem, size = 0x4, offset = 0x4, fixed_abs, tag = 'smem constant byte address 0x4 - core index']
  #allocation1 [shape = 'u32[72,128]{1,0:T(1,128)}', space=vmem, size = 0x9000, scoped, tag = 'internal scratch']
  %s0 = inlined_call_operand.hbm [shape: f32[8,1024], index: 0, kind: input, shape index: {}]
  %s1 = inlined_call_operand.hbm [shape: f32[1024,128], index: 1, kind: input, shape index: {}]
  %s2 = inlined_call_operand.vmem [shape: f32[1,128], index: 2, kind: input, shape index: {}]
  %s3 = inlined_call_operand.hbm [shape: f32[8,128], index: 3, kind: output, shape index: {}]
  %s4 = sld [smem:[#allocation0]]
  $region34: #{tpu_custom_call.1} parent=0
    _
  %s6 = ssub.s32 1, %s4
  %s7 = scalar_select 0, %s6, %s4
  $region1: #{tpu_custom_call.1} parent=0
    #allocation2 [shape = 'u8[32768]{0}', space=vmem, size = 0x8000, scoped, tag = 'input window, operand 0, single buffered']
    #allocation3 [shape = 's32[1]{0}', space=sflag, size = 0x4, scoped, tag = 'scoped memory for tpu_custom_call.1']
    #allocation4 [shape = 's32[1]{0}', space=sflag, size = 0x4, scoped, tag = 'scoped memory for tpu_custom_call.1']
    #allocation5 [shape = 'u8[524288]{0}', space=vmem, size = 0x80000, scoped, tag = 'input window, operand 1, single buffered']
    #allocation6 [shape = 's32[1]{0}', space=sflag, size = 0x4, scoped, tag = 'scoped memory for tpu_custom_call.1']
    #allocation7 [shape = 'u8[4096]{0}', space=vmem, size = 0x1000, scoped, tag = 'output window, operand 0, single buffered']
    %8 = vsyncpa [#allocation3], 0
    %9 = vsyncpa [#allocation6], 0
    %10 = vsyncpa [#allocation4], 0
    // Predicated region
    $region2: #{tpu_custom_call.1} parent=1 // pred_check
      _
    $region3: #{tpu_custom_call.1} parent=1 // pred_check_branch
      %12 = sbr.rel (0) target = $region5
    $region4: #{tpu_custom_call.1} parent=1 // pred_region
      %14 = vsyncadd [#allocation3], 0
      %s16 = sshll.u32 %s0, 4
      %s17 = int_to_ptr.hbm [resolvable:$true] %s16
      %s18 = sshll.u32 [#allocation2], 4
      %s19 = int_to_ptr.vmem [resolvable:$true] %s18
      %21 = dma.hbm_to_vmem [thread:$0]  %s17, 1024, %s19, [#allocation3]
    $region5: #{tpu_custom_call.1} parent=1 // pred_fallthru
      _
    // Predicated region
    $region6: #{tpu_custom_call.1} parent=1 // pred_check
      _
    $region7: #{tpu_custom_call.1} parent=1 // pred_check_branch
      %23 = sbr.rel (0) target = $region9
    $region8: #{tpu_custom_call.1} parent=1 // pred_region
      %25 = vsyncadd [#allocation6], 0
      %s26 = sshll.u32 %s1, 4
      %s27 = int_to_ptr.hbm [resolvable:$true] %s26
      %s28 = sshll.u32 [#allocation5], 4
      %s29 = int_to_ptr.vmem [resolvable:$true] %s28
      %34 = dma.hbm_to_vmem [thread:$0]  %s27, 16384, %s29, [#allocation6], 128, 128, 8
    $region9: #{tpu_custom_call.1} parent=1 // pred_fallthru
      _
    // Predicated region
    $region10: #{tpu_custom_call.1} parent=1 // pred_check
      _
    $region11: #{tpu_custom_call.1} parent=1 // pred_check_branch
      %36 = sbr.rel (0) target = $region13
    $region12: #{tpu_custom_call.1} parent=1 // pred_region
      _
    $region13: #{tpu_custom_call.1} parent=1 // pred_fallthru
      _
    // Predicated region
    $region14: #{tpu_custom_call.1} parent=1 // pred_check
      _
    $region15: #{tpu_custom_call.1} parent=1 // pred_check_branch
      %38 = sbr.rel (0) target = $region17
    $region16: #{tpu_custom_call.1} parent=1 // pred_region
      %40 = dma.done [#allocation3], 1024
    $region17: #{tpu_custom_call.1} parent=1 // pred_fallthru
      _
    // Predicated region
    $region18: #{tpu_custom_call.1} parent=1 // pred_check
      _
    $region19: #{tpu_custom_call.1} parent=1 // pred_check_branch
      %42 = sbr.rel (0) target = $region21
    $region20: #{tpu_custom_call.1} parent=1 // pred_region
      %44 = dma.done [#allocation6], 16384
    $region21: #{tpu_custom_call.1} parent=1 // pred_fallthru
      _
    %p45 = scmp.eq.s32.totalorder 0, 0
    // Predicated region
    $region22: #{tpu_custom_call.1} parent=1 // pred_check
      %p46 = pneg %p45
    $region23: #{tpu_custom_call.1} parent=1 // pred_check_branch
      %48 = sbr.rel (%p46) target = $region25
    $region24: #{tpu_custom_call.1} parent=1 // pred_region
      %v49 = vld [vmem:[%s2] sm:$0x1]
      %v51 = vperm.slane %v49, 0
      %53 = vst [vmem:[#allocation7] sm:$0xff] %v51
    $region25: #{tpu_custom_call.1} parent=1 // pred_fallthru
      _
    %v54 = vld [vmem:[#allocation7] sm:$0xff]
    %v55 = vld [vmem:[#allocation2] sm:$0xff]
    %v56 = vld [vmem:[#allocation2 + $0x8] sm:$0xff]
    %v57 = vld [vmem:[#allocation2 + $0x10] sm:$0xff]
    %v58 = vld [vmem:[#allocation2 + $0x18] sm:$0xff]
    %v59 = vld [vmem:[#allocation2 + $0x20] sm:$0xff]
    %v60 = vld [vmem:[#allocation2 + $0x28] sm:$0xff]
    %v61 = vld [vmem:[#allocation2 + $0x30] sm:$0xff]
    %v62 = vld [vmem:[#allocation2 + $0x38] sm:$0xff]
    %v63 = vld [vmem:[#allocation5] sm:$0xff]
    %v64 = vld [vmem:[#allocation5 + $0x8] sm:$0xff]
    %v65 = vld [vmem:[#allocation5 + $0x10] sm:$0xff]
    %v66 = vld [vmem:[#allocation5 + $0x18] sm:$0xff]
    %v67 = vld [vmem:[#allocation5 + $0x20] sm:$0xff]
    %v68 = vld [vmem:[#allocation5 + $0x28] sm:$0xff]
    %v69 = vld [vmem:[#allocation5 + $0x30] sm:$0xff]
    %v70 = vld [vmem:[#allocation5 + $0x38] sm:$0xff]
    %v71 = vld [vmem:[#allocation5 + $0x40] sm:$0xff]
    %v72 = vld [vmem:[#allocation5 + $0x48] sm:$0xff]
    %v73 = vld [vmem:[#allocation5 + $0x50] sm:$0xff]
    %v74 = vld [vmem:[#allocation5 + $0x58] sm:$0xff]
    %v75 = vld [vmem:[#allocation5 + $0x60] sm:$0xff]
    %v76 = vld [vmem:[#allocation5 + $0x68] sm:$0xff]
    %v77 = vld [vmem:[#allocation5 + $0x70] sm:$0xff]
    %v78 = vld [vmem:[#allocation5 + $0x78] sm:$0xff]
    %v79 = vld [vmem:[#allocation5 + $0x80] sm:$0xff]
    %v80 = vld [vmem:[#allocation5 + $0x88] sm:$0xff]
    %v81 = vld [vmem:[#allocation5 + $0x90] sm:$0xff]
    %v82 = vld [vmem:[#allocation5 + $0x98] sm:$0xff]
    %v83 = vld [vmem:[#allocation5 + $0xa0] sm:$0xff]
    %v84 = vld [vmem:[#allocation5 + $0xa8] sm:$0xff]
    %v85 = vld [vmem:[#allocation5 + $0xb0] sm:$0xff]
    %v86 = vld [vmem:[#allocation5 + $0xb8] sm:$0xff]
    %v87 = vld [vmem:[#allocation5 + $0xc0] sm:$0xff]
    %v88 = vld [vmem:[#allocation5 + $0xc8] sm:$0xff]
    %v89 = vld [vmem:[#allocation5 + $0xd0] sm:$0xff]
    %v90 = vld [vmem:[#allocation5 + $0xd8] sm:$0xff]
    %v91 = vld [vmem:[#allocation5 + $0xe0] sm:$0xff]
    %v92 = vld [vmem:[#allocation5 + $0xe8] sm:$0xff]
    %v93 = vld [vmem:[#allocation5 + $0xf0] sm:$0xff]
    %v94 = vld [vmem:[#allocation5 + $0xf8] sm:$0xff]
    %v95 = vld [vmem:[#allocation5 + $0x100] sm:$0xff]
    %v96 = vld [vmem:[#allocation5 + $0x108] sm:$0xff]
    %v97 = vld [vmem:[#allocation5 + $0x110] sm:$0xff]
    %v98 = vld [vmem:[#allocation5 + $0x118] sm:$0xff]
    %v99 = vld [vmem:[#allocation5 + $0x120] sm:$0xff]
    %v100 = vld [vmem:[#allocation5 + $0x128] sm:$0xff]
    %v101 = vld [vmem:[#allocation5 + $0x130] sm:$0xff]
    %v102 = vld [vmem:[#allocation5 + $0x138] sm:$0xff]
    %v103 = vld [vmem:[#allocation5 + $0x140] sm:$0xff]
    %v104 = vld [vmem:[#allocation5 + $0x148] sm:$0xff]
    %v105 = vld [vmem:[#allocation5 + $0x150] sm:$0xff]
    %v106 = vld [vmem:[#allocation5 + $0x158] sm:$0xff]
    %v107 = vld [vmem:[#allocation5 + $0x160] sm:$0xff]
    %v108 = vld [vmem:[#allocation5 + $0x168] sm:$0xff]
    %v109 = vld [vmem:[#allocation5 + $0x170] sm:$0xff]
    %v110 = vld [vmem:[#allocation5 + $0x178] sm:$0xff]
    %v111 = vld [vmem:[#allocation5 + $0x180] sm:$0xff]
    %v112 = vld [vmem:[#allocation5 + $0x188] sm:$0xff]
    %v113 = vld [vmem:[#allocation5 + $0x190] sm:$0xff]
    %v114 = vld [vmem:[#allocation5 + $0x198] sm:$0xff]
    %v115 = vld [vmem:[#allocation5 + $0x1a0] sm:$0xff]
    %v116 = vld [vmem:[#allocation5 + $0x1a8] sm:$0xff]
    %v117 = vld [vmem:[#allocation5 + $0x1b0] sm:$0xff]
    %v118 = vld [vmem:[#allocation5 + $0x1b8] sm:$0xff]
    %v119 = vld [vmem:[#allocation5 + $0x1c0] sm:$0xff]
    %v120 = vld [vmem:[#allocation5 + $0x1c8] sm:$0xff]
    %v121 = vld [vmem:[#allocation5 + $0x1d0] sm:$0xff]
    %v122 = vld [vmem:[#allocation5 + $0x1d8] sm:$0xff]
    %v123 = vld [vmem:[#allocation5 + $0x1e0] sm:$0xff]
    %v124 = vld [vmem:[#allocation5 + $0x1e8] sm:$0xff]
    %v125 = vld [vmem:[#allocation5 + $0x1f0] sm:$0xff]
    %v126 = vld [vmem:[#allocation5 + $0x1f8] sm:$0xff]
    %v127 = vld [vmem:[#allocation5 + $0x200] sm:$0xff]
    %v128 = vld [vmem:[#allocation5 + $0x208] sm:$0xff]
    %v129 = vld [vmem:[#allocation5 + $0x210] sm:$0xff]
    %v130 = vld [vmem:[#allocation5 + $0x218] sm:$0xff]
    %v131 = vld [vmem:[#allocation5 + $0x220] sm:$0xff]
    %v132 = vld [vmem:[#allocation5 + $0x228] sm:$0xff]
    %v133 = vld [vmem:[#allocation5 + $0x230] sm:$0xff]
    %v134 = vld [vmem:[#allocation5 + $0x238] sm:$0xff]
    %v135 = vld [vmem:[#allocation5 + $0x240] sm:$0xff]
    %v136 = vld [vmem:[#allocation5 + $0x248] sm:$0xff]
    %v137 = vld [vmem:[#allocation5 + $0x250] sm:$0xff]
    %v138 = vld [vmem:[#allocation5 + $0x258] sm:$0xff]
    %v139 = vld [vmem:[#allocation5 + $0x260] sm:$0xff]
    %v140 = vld [vmem:[#allocation5 + $0x268] sm:$0xff]
    %v141 = vld [vmem:[#allocation5 + $0x270] sm:$0xff]
    %v142 = vld [vmem:[#allocation5 + $0x278] sm:$0xff]
    %v143 = vld [vmem:[#allocation5 + $0x280] sm:$0xff]
    %v144 = vld [vmem:[#allocation5 + $0x288] sm:$0xff]
    %v145 = vld [vmem:[#allocation5 + $0x290] sm:$0xff]
    %v146 = vld [vmem:[#allocation5 + $0x298] sm:$0xff]
    %v147 = vld [vmem:[#allocation5 + $0x2a0] sm:$0xff]
    %v148 = vld [vmem:[#allocation5 + $0x2a8] sm:$0xff]
    %v149 = vld [vmem:[#allocation5 + $0x2b0] sm:$0xff]
    %v150 = vld [vmem:[#allocation5 + $0x2b8] sm:$0xff]
    %v151 = vld [vmem:[#allocation5 + $0x2c0] sm:$0xff]
    %v152 = vld [vmem:[#allocation5 + $0x2c8] sm:$0xff]
    %v153 = vld [vmem:[#allocation5 + $0x2d0] sm:$0xff]
    %v154 = vld [vmem:[#allocation5 + $0x2d8] sm:$0xff]
    %v155 = vld [vmem:[#allocation5 + $0x2e0] sm:$0xff]
    %v156 = vld [vmem:[#allocation5 + $0x2e8] sm:$0xff]
    %v157 = vld [vmem:[#allocation5 + $0x2f0] sm:$0xff]
    %v158 = vld [vmem:[#allocation5 + $0x2f8] sm:$0xff]
    %v159 = vld [vmem:[#allocation5 + $0x300] sm:$0xff]
    %v160 = vld [vmem:[#allocation5 + $0x308] sm:$0xff]
    %v161 = vld [vmem:[#allocation5 + $0x310] sm:$0xff]
    %v162 = vld [vmem:[#allocation5 + $0x318] sm:$0xff]
    %v163 = vld [vmem:[#allocation5 + $0x320] sm:$0xff]
    %v164 = vld [vmem:[#allocation5 + $0x328] sm:$0xff]
    %v165 = vld [vmem:[#allocation5 + $0x330] sm:$0xff]
    %v166 = vld [vmem:[#allocation5 + $0x338] sm:$0xff]
    %v167 = vld [vmem:[#allocation5 + $0x340] sm:$0xff]
    %v168 = vld [vmem:[#allocation5 + $0x348] sm:$0xff]
    %v169 = vld [vmem:[#allocation5 + $0x350] sm:$0xff]
    %v170 = vld [vmem:[#allocation5 + $0x358] sm:$0xff]
    %v171 = vld [vmem:[#allocation5 + $0x360] sm:$0xff]
    %v172 = vld [vmem:[#allocation5 + $0x368] sm:$0xff]
    %v173 = vld [vmem:[#allocation5 + $0x370] sm:$0xff]
    %v174 = vld [vmem:[#allocation5 + $0x378] sm:$0xff]
    %v175 = vld [vmem:[#allocation5 + $0x380] sm:$0xff]
    %v176 = vld [vmem:[#allocation5 + $0x388] sm:$0xff]
    %v177 = vld [vmem:[#allocation5 + $0x390] sm:$0xff]
    %v178 = vld [vmem:[#allocation5 + $0x398] sm:$0xff]
    %v179 = vld [vmem:[#allocation5 + $0x3a0] sm:$0xff]
    %v180 = vld [vmem:[#allocation5 + $0x3a8] sm:$0xff]
    %v181 = vld [vmem:[#allocation5 + $0x3b0] sm:$0xff]
    %v182 = vld [vmem:[#allocation5 + $0x3b8] sm:$0xff]
    %v183 = vld [vmem:[#allocation5 + $0x3c0] sm:$0xff]
    %v184 = vld [vmem:[#allocation5 + $0x3c8] sm:$0xff]
    %v185 = vld [vmem:[#allocation5 + $0x3d0] sm:$0xff]
    %v186 = vld [vmem:[#allocation5 + $0x3d8] sm:$0xff]
    %v187 = vld [vmem:[#allocation5 + $0x3e0] sm:$0xff]
    %v188 = vld [vmem:[#allocation5 + $0x3e8] sm:$0xff]
    %v189 = vld [vmem:[#allocation5 + $0x3f0] sm:$0xff]
    %v190 = vld [vmem:[#allocation5 + $0x3f8] sm:$0xff]
    %191 = vmatpush.msra.mxu0 %v78
    %192 = vmatpush.msra.mxu0 %v77
    %193 = vmatpush.msra.mxu0 %v76
    %194 = vmatpush.msra.mxu0 %v75
    %195 = vmatpush.msra.mxu0 %v74
    %196 = vmatpush.msra.mxu0 %v73
    %197 = vmatpush.msra.mxu0 %v72
    %198 = vmatpush.msra.mxu0 %v71
    %199 = vmatpush.msra.mxu0 %v70
    %200 = vmatpush.msra.mxu0 %v69
    %201 = vmatpush.msra.mxu0 %v68
    %202 = vmatpush.msra.mxu0 %v67
    %203 = vmatpush.msra.mxu0 %v66
    %204 = vmatpush.msra.mxu0 %v65
    %205 = vmatpush.msra.mxu0 %v64
    %206 = vmatpush.msra.mxu0 %v63
    %207 = vmatmul.f32.gmra.mxu0 %v55
    %v208 = vpop.f32.mrf.mxu0
    %v209 = vadd.f32 0.0, %v208
    %210 = vdwg.mxu0
    %211 = vmatpush.msra.mxu0 %v94
    %212 = vmatpush.msra.mxu0 %v93
    %213 = vmatpush.msra.mxu0 %v92
    %214 = vmatpush.msra.mxu0 %v91
    %215 = vmatpush.msra.mxu0 %v90
    %216 = vmatpush.msra.mxu0 %v89
    %217 = vmatpush.msra.mxu0 %v88
    %218 = vmatpush.msra.mxu0 %v87
    %219 = vmatpush.msra.mxu0 %v86
    %220 = vmatpush.msra.mxu0 %v85
    %221 = vmatpush.msra.mxu0 %v84
    %222 = vmatpush.msra.mxu0 %v83
    %223 = vmatpush.msra.mxu0 %v82
    %224 = vmatpush.msra.mxu0 %v81
    %225 = vmatpush.msra.mxu0 %v80
    %226 = vmatpush.msra.mxu0 %v79
    %227 = vmatmul.f32.gmra.mxu0 %v56
    %v228 = vpop.f32.mrf.mxu0
    %v229 = vadd.f32 %v209, %v228
    %230 = vdwg.mxu0
    %231 = vmatpush.msra.mxu0 %v110
    %232 = vmatpush.msra.mxu0 %v109
    %233 = vmatpush.msra.mxu0 %v108
    %234 = vmatpush.msra.mxu0 %v107
    %235 = vmatpush.msra.mxu0 %v106
    %236 = vmatpush.msra.mxu0 %v105
    %237 = vmatpush.msra.mxu0 %v104
    %238 = vmatpush.msra.mxu0 %v103
    %239 = vmatpush.msra.mxu0 %v102
    %240 = vmatpush.msra.mxu0 %v101
    %241 = vmatpush.msra.mxu0 %v100
    %242 = vmatpush.msra.mxu0 %v99
    %243 = vmatpush.msra.mxu0 %v98
    %244 = vmatpush.msra.mxu0 %v97
    %245 = vmatpush.msra.mxu0 %v96
    %246 = vmatpush.msra.mxu0 %v95
    %247 = vmatmul.f32.gmra.mxu0 %v57
    %v248 = vpop.f32.mrf.mxu0
    %v249 = vadd.f32 %v229, %v248
    %250 = vdwg.mxu0
    %251 = vmatpush.msra.mxu0 %v126
    %252 = vmatpush.msra.mxu0 %v125
    %253 = vmatpush.msra.mxu0 %v124
    %254 = vmatpush.msra.mxu0 %v123
    %255 = vmatpush.msra.mxu0 %v122
    %256 = vmatpush.msra.mxu0 %v121
    %257 = vmatpush.msra.mxu0 %v120
    %258 = vmatpush.msra.mxu0 %v119
    %259 = vmatpush.msra.mxu0 %v118
    %260 = vmatpush.msra.mxu0 %v117
    %261 = vmatpush.msra.mxu0 %v116
    %262 = vmatpush.msra.mxu0 %v115
    %263 = vmatpush.msra.mxu0 %v114
    %264 = vmatpush.msra.mxu0 %v113
    %265 = vmatpush.msra.mxu0 %v112
    %266 = vmatpush.msra.mxu0 %v111
    %267 = vmatmul.f32.gmra.mxu0 %v58
    %v268 = vpop.f32.mrf.mxu0
    %v269 = vadd.f32 %v249, %v268
    %270 = vdwg.mxu0
    %271 = vmatpush.msra.mxu0 %v142
    %272 = vmatpush.msra.mxu0 %v141
    %273 = vmatpush.msra.mxu0 %v140
    %274 = vmatpush.msra.mxu0 %v139
    %275 = vmatpush.msra.mxu0 %v138
    %276 = vmatpush.msra.mxu0 %v137
    %277 = vmatpush.msra.mxu0 %v136
    %278 = vmatpush.msra.mxu0 %v135
    %279 = vmatpush.msra.mxu0 %v134
    %280 = vmatpush.msra.mxu0 %v133
    %281 = vmatpush.msra.mxu0 %v132
    %282 = vmatpush.msra.mxu0 %v131
    %283 = vmatpush.msra.mxu0 %v130
    %284 = vmatpush.msra.mxu0 %v129
    %285 = vmatpush.msra.mxu0 %v128
    %286 = vmatpush.msra.mxu0 %v127
    %287 = vmatmul.f32.gmra.mxu0 %v59
    %v288 = vpop.f32.mrf.mxu0
    %v289 = vadd.f32 %v269, %v288
    %290 = vdwg.mxu0
    %291 = vmatpush.msra.mxu0 %v158
    %292 = vmatpush.msra.mxu0 %v157
    %293 = vmatpush.msra.mxu0 %v156
    %294 = vmatpush.msra.mxu0 %v155
    %295 = vmatpush.msra.mxu0 %v154
    %296 = vmatpush.msra.mxu0 %v153
    %297 = vmatpush.msra.mxu0 %v152
    %298 = vmatpush.msra.mxu0 %v151
    %299 = vmatpush.msra.mxu0 %v150
    %300 = vmatpush.msra.mxu0 %v149
    %301 = vmatpush.msra.mxu0 %v148
    %302 = vmatpush.msra.mxu0 %v147
    %303 = vmatpush.msra.mxu0 %v146
    %304 = vmatpush.msra.mxu0 %v145
    %305 = vmatpush.msra.mxu0 %v144
    %306 = vmatpush.msra.mxu0 %v143
    %307 = vmatmul.f32.gmra.mxu0 %v60
    %v308 = vpop.f32.mrf.mxu0
    %v309 = vadd.f32 %v289, %v308
    %310 = vdwg.mxu0
    %311 = vmatpush.msra.mxu0 %v174
    %312 = vmatpush.msra.mxu0 %v173
    %313 = vmatpush.msra.mxu0 %v172
    %314 = vmatpush.msra.mxu0 %v171
    %315 = vmatpush.msra.mxu0 %v170
    %316 = vmatpush.msra.mxu0 %v169
    %317 = vmatpush.msra.mxu0 %v168
    %318 = vmatpush.msra.mxu0 %v167
    %319 = vmatpush.msra.mxu0 %v166
    %320 = vmatpush.msra.mxu0 %v165
    %321 = vmatpush.msra.mxu0 %v164
    %322 = vmatpush.msra.mxu0 %v163
    %323 = vmatpush.msra.mxu0 %v162
    %324 = vmatpush.msra.mxu0 %v161
    %325 = vmatpush.msra.mxu0 %v160
    %326 = vmatpush.msra.mxu0 %v159
    %327 = vmatmul.f32.gmra.mxu0 %v61
    %v328 = vpop.f32.mrf.mxu0
    %v329 = vadd.f32 %v309, %v328
    %330 = vdwg.mxu0
    %331 = vmatpush.msra.mxu0 %v190
    %332 = vmatpush.msra.mxu0 %v189
    %333 = vmatpush.msra.mxu0 %v188
    %334 = vmatpush.msra.mxu0 %v187
    %335 = vmatpush.msra.mxu0 %v186
    %336 = vmatpush.msra.mxu0 %v185
    %337 = vmatpush.msra.mxu0 %v184
    %338 = vmatpush.msra.mxu0 %v183
    %339 = vmatpush.msra.mxu0 %v182
    %340 = vmatpush.msra.mxu0 %v181
    %341 = vmatpush.msra.mxu0 %v180
    %342 = vmatpush.msra.mxu0 %v179
    %343 = vmatpush.msra.mxu0 %v178
    %344 = vmatpush.msra.mxu0 %v177
    %345 = vmatpush.msra.mxu0 %v176
    %346 = vmatpush.msra.mxu0 %v175
    %347 = vmatmul.f32.gmra.mxu0 %v62
    %v348 = vpop.f32.mrf.mxu0
    %v349 = vadd.f32 %v329, %v348
    %350 = vdwg.mxu0
    %v351 = vadd.f32 %v54, %v349
    %352 = vst [vmem:[#allocation7] sm:$0xff] %v351
    // Predicated region
    $region26: #{tpu_custom_call.1} parent=1 // pred_check
      _
    $region27: #{tpu_custom_call.1} parent=1 // pred_check_branch
      %354 = sbr.rel (0) target = $region29
    $region28: #{tpu_custom_call.1} parent=1 // pred_region
      %356 = vsyncadd [#allocation4], 0
      %s358 = sshll.u32 [#allocation7], 4
      %s359 = int_to_ptr.vmem [resolvable:$true] %s358
      %s360 = sshll.u32 %s3, 4
      %s361 = int_to_ptr.hbm [resolvable:$true] %s360
      %363 = dma.vmem_to_hbm [thread:$0]  %s359, 128, %s361, [#allocation4]
    $region29: #{tpu_custom_call.1} parent=1 // pred_fallthru
      _
    // Predicated region
    $region30: #{tpu_custom_call.1} parent=1 // pred_check
      _
    $region31: #{tpu_custom_call.1} parent=1 // pred_check_branch
      %365 = sbr.rel (0) target = $region33
    $region32: #{tpu_custom_call.1} parent=1 // pred_region
      %367 = dma.done [#allocation4], 128
    $region33: #{tpu_custom_call.1} parent=1 // pred_fallthru
      _
    %368 = vsyncpa [#allocation3], 1
    %369 = vsyncpa [#allocation6], 1
    %370 = vsyncpa [#allocation4], 1

</llo_original>
